<compile_context>
chip_gen: v5e
topology: v5e:2x2
jax: 0.10.0
libtpu: 0.0.40
codegen_flags: <defaults>
</compile_context>

<pallas_src>
import numpy as np
import jax
import jax.numpy as jnp
from jax.experimental import pallas as pl
from jax.experimental.pallas import tpu as pltpu


# ----------------------------- host-side setup ------------------------------

def _bilinear_matrix(out_size: int, in_size: int, offset: int = 0,
                     region: int | None = None) -> np.ndarray:
    """Row-stochastic (out_size, in_size) bilinear interpolation matrix.

    Maps a window of length `region` starting at `offset` inside a source
    axis of length `in_size` onto `out_size` output samples (half-pixel
    centers, edges clamped).
    """
    if region is None:
        region = in_size
    o = np.arange(out_size, dtype=np.float64)
    s = (o + 0.5) * (region / out_size) - 0.5
    s = np.clip(s, 0.0, region - 1.0)
    i0 = np.floor(s).astype(np.int64)
    i1 = np.minimum(i0 + 1, region - 1)
    w = (s - i0).astype(np.float32)
    m = np.zeros((out_size, in_size), dtype=np.float32)
    m[np.arange(out_size), offset + i0] += (1.0 - w)
    m[np.arange(out_size), offset + i1] += w
    return m


def _vmem_budget_bytes() -> int:
    """Per-step VMEM budget: 3/4 of physical VMEM, capped at ~100 MiB.

    v5e/v6e (128 MiB physical) -> 96 MiB; v7x (64 MiB physical) -> 48 MiB.
    """
    try:
        cap = pltpu.get_tpu_info().vmem_capacity_bytes
    except Exception:
        cap = 64 * 1024 * 1024      # conservative fallback (v7x physical)
    return int(min(100 * 1024 * 1024, (cap * 3) // 4))


def _slab_footprint_bytes(T: int, H: int, W: int, O: int,
                          in_itemsize: int) -> int:
    """VMEM bytes needed for a T-slab grid step (conservative)."""
    in_buf = 2 * T * H * W * in_itemsize        # double-buffered input slab
    x_cast = T * H * W * 2                      # in-kernel bf16 copy of x
    tmp = T * H * (2 * O) * 4                   # f32 stage-1 result
    m_scratch = (2 * H) * (T * O) * 4           # reorganized stage-2 operand
    out_buf = 2 * O * (T * O) * 4               # double-buffered output block
    weights = 2 * (W * (2 * O) * 2              # wcomb bf16 (worst case 2x)
                   + O * (2 * H) * 4)           # hcomb f32  (worst case 2x)
    return in_buf + x_cast + tmp + m_scratch + out_buf + weights


def _choose_slab(N: int, H: int, W: int, O: int, in_itemsize: int,
                 budget: int) -> int:
    """Largest slab count T <= N whose footprint fits the VMEM budget.

    Prefers an exact divisor of N (no padding); falls back to a non-divisor
    (padding path in the wrapper) only when the best divisor would be a >2x
    perf cliff (e.g. prime N).
    """
    fits = [t for t in range(1, N + 1)
            if _slab_footprint_bytes(t, H, W, O, in_itemsize) <= budget]
    t_max = max(fits) if fits else 1
    t_div = max(d for d in range(1, t_max + 1) if N % d == 0)
    return t_div if 2 * t_div >= t_max else t_max


def _const_spec(shape: tuple, nbytes: int) -> pl.BlockSpec:
    """BlockSpec for a grid-invariant operand.

    The block index never changes, so double-buffering it is pure VMEM waste;
    single-buffer it once it is big enough to matter (>= 1 MiB).  Falls back
    to the default spec if this JAX version rejects the pipeline_mode kwarg.
    """
    index_map = lambda i: (0,) * len(shape)
    if nbytes >= (1 << 20):
        try:
            return pl.BlockSpec(shape, index_map,
                                pipeline_mode=pl.Buffered(buffer_count=1))
        except Exception:
            pass
    return pl.BlockSpec(shape, index_map)


# --------------------------------- kernel -----------------------------------

def _center_aware_kernel(x_ref, wcomb_ref, hcomb_ref, o_ref, m_ref):
    # x_ref:     (T*H, W)   f32/bf16  image slabs for this grid step
    # wcomb_ref: (W, 2*O)   bf16      [Rw^T | Cw^T]  (pre-transposed, shared-x)
    # hcomb_ref: (O, 2*H)   f32       [(1-a)*Rh | a*Ch]  (alpha folded in)
    # o_ref:     (O, T*O)   f32       lane-dense output block
    # m_ref:     (2*H, T*O) f32       scratch: reorganized stage-1 result
    O, H2 = hcomb_ref.shape
    H = H2 // 2
    TH, _ = x_ref.shape
    T = TH // H

    # Stage 1: ONE fat MXU matmul over the W axis for all T slabs & both views.
    x2d = x_ref[...].astype(jnp.bfloat16)                         # (T*H, W)
    tmp = jnp.dot(x2d, wcomb_ref[...],
                  preferred_element_type=jnp.float32)             # (T*H, 2O) f32

    # Reorganize tmp -> (2H, T*O): rows [0:H] = global view, [H:2H] = center
    # view; slab t occupies lane columns [t*O, (t+1)*O).  T is small & static
    # so the copy loop is unrolled; this is cheap VMEM traffic compared with
    # the input read and keeps the stage-2 matmul / output stores lane-dense.
    for t in range(T):
        sl = tmp[t * H:(t + 1) * H, :]                            # (H, 2O)
        m_ref[0:H, t * O:(t + 1) * O] = sl[:, 0:O]
        m_ref[H:2 * H, t * O:(t + 1) * O] = sl[:, O:2 * O]

    # Stage 2: ONE matmul fuses the H contraction of both views and the alpha
    # blend (folded into hcomb); kept in f32 for accuracy (FLOPs are small).
    o_ref[...] = jnp.dot(hcomb_ref[...], m_ref[...],
                         preferred_element_type=jnp.float32).astype(o_ref.dtype)


# -------------------------------- wrapper ------------------------------------

def center_aware_only(x: jax.Array, centercrop_size: int, output_size: int,
                      alpha: float = 0.5) -> jax.Array:
    """x: [B, C, H, W] (f32 or bf16) -> [B, C, output_size, output_size] f32."""
    B, C, H, W = x.shape
    O = int(output_size)
    CC = int(centercrop_size)
    N = B * C

    # Interpolation matrices (plain numpy, host side).
    rh = _bilinear_matrix(O, H)                                    # (O, H)
    rw = _bilinear_matrix(O, W)                                    # (O, W)
    # torchvision CenterCrop top-left corner: round((H - CC) / 2)
    off_h = int(round((H - CC) / 2.0))
    off_w = int(round((W - CC) / 2.0))
    ch = _bilinear_matrix(O, H, offset=off_h, region=CC)           # (O, H)
    cw = _bilinear_matrix(O, W, offset=off_w, region=CC)           # (O, W)

    # Stage-1 operand (shared x): x @ [Rw^T | Cw^T], bf16 MXU fast path.
    wcomb = jnp.asarray(np.concatenate([rw.T, cw.T], axis=1),
                        dtype=jnp.bfloat16)                        # (W, 2O)
    # Stage-2 operand: blend weights folded in, kept f32 for accuracy.
    hcomb = jnp.asarray(
        np.concatenate([(1.0 - float(alpha)) * rh, float(alpha) * ch], axis=1),
        dtype=jnp.float32)                                         # (O, 2H)

    # bf16 input is accepted as-is (halves HBM read on this read-bound kernel);
    # anything else is normalized to f32.
    if x.dtype not in (jnp.float32, jnp.bfloat16):
        x = x.astype(jnp.float32)
    in_itemsize = int(x.dtype.itemsize)

    # Slab size from an explicit VMEM budget (generation-aware via get_tpu_info).
    budget = _vmem_budget_bytes()
    T = _choose_slab(N, H, W, O, in_itemsize, budget)
    NB = -(-N // T)
    N_pad = NB * T

    x_flat = x.reshape(N * H, W)                                   # free view
    if N_pad > N:
        x_flat = jnp.pad(x_flat, ((0, (N_pad - N) * H), (0, 0)))

    vmem_limit = int(max(budget,
                         _slab_footprint_bytes(T, H, W, O, in_itemsize)))

    flops = 2 * N_pad * H * W * (2 * O) + 2 * N_pad * (2 * H) * O * O
    bytes_accessed = (N_pad * H * W * in_itemsize + N_pad * O * O * 4
                      + int(wcomb.size) * 2 + int(hcomb.size) * 4)

    out2d = pl.pallas_call(
        _center_aware_kernel,
        out_shape=jax.ShapeDtypeStruct((O, N_pad * O), jnp.float32),
        grid_spec=pltpu.PrefetchScalarGridSpec(
            num_scalar_prefetch=0,
            grid=(NB,),
            in_specs=[
                pl.BlockSpec((T * H, W), lambda i: (i, 0)),        # image slabs
                _const_spec((W, 2 * O), int(wcomb.size) * 2),      # [Rw^T|Cw^T]
                _const_spec((O, 2 * H), int(hcomb.size) * 4),      # [(1-a)Rh|aCh]
            ],
            out_specs=pl.BlockSpec((O, T * O), lambda i: (0, i)),  # lane-dense
            scratch_shapes=[pltpu.VMEM((2 * H, T * O), jnp.float32)],
        ),
        compiler_params=pltpu.CompilerParams(
            dimension_semantics=("parallel",),
            vmem_limit_bytes=vmem_limit),
        cost_estimate=pl.CostEstimate(
            flops=flops, transcendentals=0, bytes_accessed=bytes_accessed),
    )(x_flat, wcomb, hcomb)

    # Restore (B, C, O, O): cheap (output is small relative to the input read).
    out2d = out2d[:, :N * O]
    return out2d.reshape(O, N, O).transpose(1, 0, 2).reshape(B, C, O, O)


# ------------------------------- reference -----------------------------------

def _reference(x, centercrop_size, output_size, alpha):
    """Pure-JAX f32 reference using the same interpolation matrices."""
    B, C, H, W = x.shape
    O = output_size
    CC = centercrop_size
    rh = jnp.asarray(_bilinear_matrix(O, H))
    rw = jnp.asarray(_bilinear_matrix(O, W))
    off_h = int(round((H - CC) / 2.0))
    off_w = int(round((W - CC) / 2.0))
    ch = jnp.asarray(_bilinear_matrix(O, H, offset=off_h, region=CC))
    cw = jnp.asarray(_bilinear_matrix(O, W, offset=off_w, region=CC))
    g = jnp.einsum('oh,bchw,pw->bcop', rh, x, rw)
    c = jnp.einsum('oh,bchw,pw->bcop', ch, x, cw)
    return (1.0 - alpha) * g + alpha * c


if __name__ == "__main__":
    B, C, H, W = 2, 4, 16, 16
    CENTERCROP = 8
    OUTPUT = 8
    ALPHA = 0.5

    key = jax.random.PRNGKey(0)
    x = jax.random.uniform(key, (B, C, H, W), dtype=jnp.float32)   # NCHW, [0, 1)

    out = center_aware_only(x, CENTERCROP, OUTPUT, ALPHA)
    out = jax.block_until_ready(out)

    ref = _reference(x, CENTERCROP, OUTPUT, ALPHA)
    assert out.shape == (B, C, OUTPUT, OUTPUT)
    # Stage 1 runs bf16-in / f32-accumulate on the MXU -> loose tolerance.
    np.testing.assert_allclose(np.asarray(out), np.asarray(ref),
                               rtol=2e-2, atol=2e-2)

    print("KERNEL_OK")
</pallas_src>

<mosaic_0001>
module attributes {stable_mosaic.version = 11 : i64} {
  func.func @_center_aware_kernel(%arg0: i32, %arg1: memref<128x16xf32, #tpu.memory_space<vmem>>, %arg2: memref<16x16xbf16, #tpu.memory_space<vmem>>, %arg3: memref<8x32xf32, #tpu.memory_space<vmem>>, %arg4: memref<8x64xf32, #tpu.memory_space<vmem>>, %arg5: memref<32x64xf32, #tpu.memory_space<vmem>>) attributes {dimension_semantics = [#tpu.dimension_semantics<parallel>], iteration_bounds = array<i64: 1>, scalar_prefetch = 0 : i64, scratch_operands = 1 : i64, tpu.core_type = #tpu.core_type<tc>, window_params = [{transform_indices = @transform_0, window_bounds = array<i64: 128, 16>}, {pipeline_mode = #tpu.pipeline_mode<synchronous>, transform_indices = @transform_1, window_bounds = array<i64: 16, 16>}, {pipeline_mode = #tpu.pipeline_mode<synchronous>, transform_indices = @transform_2, window_bounds = array<i64: 8, 32>}, {transform_indices = @transform_3, window_bounds = array<i64: 8, 64>}]} {
    %c0 = arith.constant 0 : index
    %c0_0 = arith.constant 0 : index
    %0 = vector.load %arg1[%c0, %c0_0] : memref<128x16xf32, #tpu.memory_space<vmem>>, vector<128x16xf32>
    %1 = arith.truncf %0 : vector<128x16xf32> to vector<128x16xbf16>
    %c0_1 = arith.constant 0 : index
    %c0_2 = arith.constant 0 : index
    %2 = vector.load %arg2[%c0_1, %c0_2] : memref<16x16xbf16, #tpu.memory_space<vmem>>, vector<16x16xbf16>
    %cst = arith.constant dense<0.000000e+00> : vector<128x16xf32>
    %3 = tpu.matmul %1, %2, %cst {dimension_numbers = #tpu.dot_dimension_numbers<[1], [0], [0], [1], [0, 0, 1, 1], [], []>} : vector<128x16xbf16>, vector<16x16xbf16>, vector<128x16xf32> -> vector<128x16xf32>
    %4 = vector.extract_strided_slice %3 {offsets = [0, 0], sizes = [16, 16], strides = [1, 1]} : vector<128x16xf32> to vector<16x16xf32>
    %5 = vector.extract_strided_slice %4 {offsets = [0, 0], sizes = [16, 8], strides = [1, 1]} : vector<16x16xf32> to vector<16x8xf32>
    %c0_3 = arith.constant 0 : index
    %c0_4 = arith.constant 0 : index
    %6 = vector.load %arg5[%c0_3, %c0_4] : memref<32x64xf32, #tpu.memory_space<vmem>>, vector<16x8xf32>
    tpu.vector_store %arg5[%c0_3, %c0_4], %5 {strides = array<i32>} : memref<32x64xf32, #tpu.memory_space<vmem>>, vector<16x8xf32>,
    %7 = vector.extract_strided_slice %4 {offsets = [0, 8], sizes = [16, 8], strides = [1, 1]} : vector<16x16xf32> to vector<16x8xf32>
    %c16 = arith.constant 16 : index
    %c0_5 = arith.constant 0 : index
    %8 = vector.load %arg5[%c16, %c0_5] : memref<32x64xf32, #tpu.memory_space<vmem>>, vector<16x8xf32>
    tpu.vector_store %arg5[%c16, %c0_5], %7 {strides = array<i32>} : memref<32x64xf32, #tpu.memory_space<vmem>>, vector<16x8xf32>,
    %9 = vector.extract_strided_slice %3 {offsets = [16, 0], sizes = [16, 16], strides = [1, 1]} : vector<128x16xf32> to vector<16x16xf32>
    %10 = vector.extract_strided_slice %9 {offsets = [0, 0], sizes = [16, 8], strides = [1, 1]} : vector<16x16xf32> to vector<16x8xf32>
    %c0_6 = arith.constant 0 : index
    %c8 = arith.constant 8 : index
    %11 = vector.load %arg5[%c0_6, %c8] : memref<32x64xf32, #tpu.memory_space<vmem>>, vector<16x8xf32>
    tpu.vector_store %arg5[%c0_6, %c8], %10 {strides = array<i32>} : memref<32x64xf32, #tpu.memory_space<vmem>>, vector<16x8xf32>,
    %12 = vector.extract_strided_slice %9 {offsets = [0, 8], sizes = [16, 8], strides = [1, 1]} : vector<16x16xf32> to vector<16x8xf32>
    %c16_7 = arith.constant 16 : index
    %c8_8 = arith.constant 8 : index
    %13 = vector.load %arg5[%c16_7, %c8_8] : memref<32x64xf32, #tpu.memory_space<vmem>>, vector<16x8xf32>
    tpu.vector_store %arg5[%c16_7, %c8_8], %12 {strides = array<i32>} : memref<32x64xf32, #tpu.memory_space<vmem>>, vector<16x8xf32>,
    %14 = vector.extract_strided_slice %3 {offsets = [32, 0], sizes = [16, 16], strides = [1, 1]} : vector<128x16xf32> to vector<16x16xf32>
    %15 = vector.extract_strided_slice %14 {offsets = [0, 0], sizes = [16, 8], strides = [1, 1]} : vector<16x16xf32> to vector<16x8xf32>
    %c0_9 = arith.constant 0 : index
    %c16_10 = arith.constant 16 : index
    %16 = vector.load %arg5[%c0_9, %c16_10] : memref<32x64xf32, #tpu.memory_space<vmem>>, vector<16x8xf32>
    tpu.vector_store %arg5[%c0_9, %c16_10], %15 {strides = array<i32>} : memref<32x64xf32, #tpu.memory_space<vmem>>, vector<16x8xf32>,
    %17 = vector.extract_strided_slice %14 {offsets = [0, 8], sizes = [16, 8], strides = [1, 1]} : vector<16x16xf32> to vector<16x8xf32>
    %c16_11 = arith.constant 16 : index
    %c16_12 = arith.constant 16 : index
    %18 = vector.load %arg5[%c16_11, %c16_12] : memref<32x64xf32, #tpu.memory_space<vmem>>, vector<16x8xf32>
    tpu.vector_store %arg5[%c16_11, %c16_12], %17 {strides = array<i32>} : memref<32x64xf32, #tpu.memory_space<vmem>>, vector<16x8xf32>,
    %19 = vector.extract_strided_slice %3 {offsets = [48, 0], sizes = [16, 16], strides = [1, 1]} : vector<128x16xf32> to vector<16x16xf32>
    %20 = vector.extract_strided_slice %19 {offsets = [0, 0], sizes = [16, 8], strides = [1, 1]} : vector<16x16xf32> to vector<16x8xf32>
    %c0_13 = arith.constant 0 : index
    %c24 = arith.constant 24 : index
    %21 = vector.load %arg5[%c0_13, %c24] : memref<32x64xf32, #tpu.memory_space<vmem>>, vector<16x8xf32>
    tpu.vector_store %arg5[%c0_13, %c24], %20 {strides = array<i32>} : memref<32x64xf32, #tpu.memory_space<vmem>>, vector<16x8xf32>,
    %22 = vector.extract_strided_slice %19 {offsets = [0, 8], sizes = [16, 8], strides = [1, 1]} : vector<16x16xf32> to vector<16x8xf32>
    %c16_14 = arith.constant 16 : index
    %c24_15 = arith.constant 24 : index
    %23 = vector.load %arg5[%c16_14, %c24_15] : memref<32x64xf32, #tpu.memory_space<vmem>>, vector<16x8xf32>
    tpu.vector_store %arg5[%c16_14, %c24_15], %22 {strides = array<i32>} : memref<32x64xf32, #tpu.memory_space<vmem>>, vector<16x8xf32>,
    %24 = vector.extract_strided_slice %3 {offsets = [64, 0], sizes = [16, 16], strides = [1, 1]} : vector<128x16xf32> to vector<16x16xf32>
    %25 = vector.extract_strided_slice %24 {offsets = [0, 0], sizes = [16, 8], strides = [1, 1]} : vector<16x16xf32> to vector<16x8xf32>
    %c0_16 = arith.constant 0 : index
    %c32 = arith.constant 32 : index
    %26 = vector.load %arg5[%c0_16, %c32] : memref<32x64xf32, #tpu.memory_space<vmem>>, vector<16x8xf32>
    tpu.vector_store %arg5[%c0_16, %c32], %25 {strides = array<i32>} : memref<32x64xf32, #tpu.memory_space<vmem>>, vector<16x8xf32>,
    %27 = vector.extract_strided_slice %24 {offsets = [0, 8], sizes = [16, 8], strides = [1, 1]} : vector<16x16xf32> to vector<16x8xf32>
    %c16_17 = arith.constant 16 : index
    %c32_18 = arith.constant 32 : index
    %28 = vector.load %arg5[%c16_17, %c32_18] : memref<32x64xf32, #tpu.memory_space<vmem>>, vector<16x8xf32>
    tpu.vector_store %arg5[%c16_17, %c32_18], %27 {strides = array<i32>} : memref<32x64xf32, #tpu.memory_space<vmem>>, vector<16x8xf32>,
    %29 = vector.extract_strided_slice %3 {offsets = [80, 0], sizes = [16, 16], strides = [1, 1]} : vector<128x16xf32> to vector<16x16xf32>
    %30 = vector.extract_strided_slice %29 {offsets = [0, 0], sizes = [16, 8], strides = [1, 1]} : vector<16x16xf32> to vector<16x8xf32>
    %c0_19 = arith.constant 0 : index
    %c40 = arith.constant 40 : index
    %31 = vector.load %arg5[%c0_19, %c40] : memref<32x64xf32, #tpu.memory_space<vmem>>, vector<16x8xf32>
    tpu.vector_store %arg5[%c0_19, %c40], %30 {strides = array<i32>} : memref<32x64xf32, #tpu.memory_space<vmem>>, vector<16x8xf32>,
    %32 = vector.extract_strided_slice %29 {offsets = [0, 8], sizes = [16, 8], strides = [1, 1]} : vector<16x16xf32> to vector<16x8xf32>
    %c16_20 = arith.constant 16 : index
    %c40_21 = arith.constant 40 : index
    %33 = vector.load %arg5[%c16_20, %c40_21] : memref<32x64xf32, #tpu.memory_space<vmem>>, vector<16x8xf32>
    tpu.vector_store %arg5[%c16_20, %c40_21], %32 {strides = array<i32>} : memref<32x64xf32, #tpu.memory_space<vmem>>, vector<16x8xf32>,
    %34 = vector.extract_strided_slice %3 {offsets = [96, 0], sizes = [16, 16], strides = [1, 1]} : vector<128x16xf32> to vector<16x16xf32>
    %35 = vector.extract_strided_slice %34 {offsets = [0, 0], sizes = [16, 8], strides = [1, 1]} : vector<16x16xf32> to vector<16x8xf32>
    %c0_22 = arith.constant 0 : index
    %c48 = arith.constant 48 : index
    %36 = vector.load %arg5[%c0_22, %c48] : memref<32x64xf32, #tpu.memory_space<vmem>>, vector<16x8xf32>
    tpu.vector_store %arg5[%c0_22, %c48], %35 {strides = array<i32>} : memref<32x64xf32, #tpu.memory_space<vmem>>, vector<16x8xf32>,
    %37 = vector.extract_strided_slice %34 {offsets = [0, 8], sizes = [16, 8], strides = [1, 1]} : vector<16x16xf32> to vector<16x8xf32>
    %c16_23 = arith.constant 16 : index
    %c48_24 = arith.constant 48 : index
    %38 = vector.load %arg5[%c16_23, %c48_24] : memref<32x64xf32, #tpu.memory_space<vmem>>, vector<16x8xf32>
    tpu.vector_store %arg5[%c16_23, %c48_24], %37 {strides = array<i32>} : memref<32x64xf32, #tpu.memory_space<vmem>>, vector<16x8xf32>,
    %39 = vector.extract_strided_slice %3 {offsets = [112, 0], sizes = [16, 16], strides = [1, 1]} : vector<128x16xf32> to vector<16x16xf32>
    %40 = vector.extract_strided_slice %39 {offsets = [0, 0], sizes = [16, 8], strides = [1, 1]} : vector<16x16xf32> to vector<16x8xf32>
    %c0_25 = arith.constant 0 : index
    %c56 = arith.constant 56 : index
    %41 = vector.load %arg5[%c0_25, %c56] : memref<32x64xf32, #tpu.memory_space<vmem>>, vector<16x8xf32>
    tpu.vector_store %arg5[%c0_25, %c56], %40 {strides = array<i32>} : memref<32x64xf32, #tpu.memory_space<vmem>>, vector<16x8xf32>,
    %42 = vector.extract_strided_slice %39 {offsets = [0, 8], sizes = [16, 8], strides = [1, 1]} : vector<16x16xf32> to vector<16x8xf32>
    %c16_26 = arith.constant 16 : index
    %c56_27 = arith.constant 56 : index
    %43 = vector.load %arg5[%c16_26, %c56_27] : memref<32x64xf32, #tpu.memory_space<vmem>>, vector<16x8xf32>
    tpu.vector_store %arg5[%c16_26, %c56_27], %42 {strides = array<i32>} : memref<32x64xf32, #tpu.memory_space<vmem>>, vector<16x8xf32>,
    %c0_28 = arith.constant 0 : index
    %c0_29 = arith.constant 0 : index
    %44 = vector.load %arg3[%c0_28, %c0_29] : memref<8x32xf32, #tpu.memory_space<vmem>>, vector<8x32xf32>
    %c0_30 = arith.constant 0 : index
    %c0_31 = arith.constant 0 : index
    %45 = vector.load %arg5[%c0_30, %c0_31] : memref<32x64xf32, #tpu.memory_space<vmem>>, vector<32x64xf32>
    %cst_32 = arith.constant dense<0.000000e+00> : vector<8x64xf32>
    %46 = tpu.matmul %44, %45, %cst_32 {dimension_numbers = #tpu.dot_dimension_numbers<[1], [0], [0], [1], [0, 0, 1, 1], [], []>} : vector<8x32xf32>, vector<32x64xf32>, vector<8x64xf32> -> vector<8x64xf32>
    %c0_33 = arith.constant 0 : index
    %c0_34 = arith.constant 0 : index
    %47 = vector.load %arg4[%c0_33, %c0_34] : memref<8x64xf32, #tpu.memory_space<vmem>>, vector<8x64xf32>
    tpu.vector_store %arg4[%c0_33, %c0_34], %46 {strides = array<i32>} : memref<8x64xf32, #tpu.memory_space<vmem>>, vector<8x64xf32>,
    return
  }
  func.func @transform_0(%arg0: i32) -> (i32, i32) {
    %c0_i32 = arith.constant 0 : i32
    %c0_i32_0 = arith.constant 0 : i32
    return %arg0, %c0_i32 : i32, i32
  }
  func.func @transform_1(%arg0: i32) -> (i32, i32) {
    %c0_i32 = arith.constant 0 : i32
    %c0_i32_0 = arith.constant 0 : i32
    %c0_i32_1 = arith.constant 0 : i32
    return %c0_i32, %c0_i32_0 : i32, i32
  }
  func.func @transform_2(%arg0: i32) -> (i32, i32) {
    %c0_i32 = arith.constant 0 : i32
    %c0_i32_0 = arith.constant 0 : i32
    %c0_i32_1 = arith.constant 0 : i32
    return %c0_i32, %c0_i32_0 : i32, i32
  }
  func.func @transform_3(%arg0: i32) -> (i32, i32) {
    %c0_i32 = arith.constant 0 : i32
    %c0_i32_0 = arith.constant 0 : i32
    return %c0_i32, %arg0 : i32, i32
  }
}

</mosaic_0001>

<llo_original>
// kernel: tpu_custom_call.1
$region0: #{tpu_custom_call.1}
  #allocation0 [shape = 'u32[]', space=smem, size = 0x4, offset = 0x4, fixed_abs, tag = 'smem constant byte address 0x4 - core index']
  #allocation1 [shape = 'u32[72,128]{1,0:T(1,128)}', space=vmem, size = 0x9000, scoped, tag = 'internal scratch']
  #allocation2 [shape = 'f32[32,64]{1,0:T(8,128)}', space=vmem, size = 0x4000, scoped, tag = 'scratch operand']
  %s0 = inlined_call_operand.vmem [shape: f32[128,16], index: 0, kind: input, shape index: {}]
  %s1 = inlined_call_operand.vmem [shape: bf16[16,16], index: 1, kind: input, shape index: {}]
  %s2 = inlined_call_operand.vmem [shape: f32[8,32], index: 2, kind: input, shape index: {}]
  %s3 = inlined_call_operand.hbm [shape: f32[8,64], index: 3, kind: output, shape index: {}]
  %s4 = sld [smem:[#allocation0]]
  $region22: #{tpu_custom_call.1} parent=0
    _
  %s6 = ssub.s32 1, %s4
  %s7 = scalar_select 0, %s6, %s4
  $region1: #{tpu_custom_call.1} parent=0
    #allocation3 [shape = 'u8[4096]{0}', space=vmem, size = 0x1000, scoped, tag = 'output window, operand 0, single buffered']
    #allocation4 [shape = 's32[1]{0}', space=sflag, size = 0x4, scoped, tag = 'scoped memory for tpu_custom_call.1']
    %8 = vsyncpa [#allocation4], 0
    // Predicated region
    $region2: #{tpu_custom_call.1} parent=1 // pred_check
      _
    $region3: #{tpu_custom_call.1} parent=1 // pred_check_branch
      %10 = sbr.rel (0) target = $region5
    $region4: #{tpu_custom_call.1} parent=1 // pred_region
      _
    $region5: #{tpu_custom_call.1} parent=1 // pred_fallthru
      _
    // Predicated region
    $region6: #{tpu_custom_call.1} parent=1 // pred_check
      _
    $region7: #{tpu_custom_call.1} parent=1 // pred_check_branch
      %12 = sbr.rel (0) target = $region9
    $region8: #{tpu_custom_call.1} parent=1 // pred_region
      _
    $region9: #{tpu_custom_call.1} parent=1 // pred_fallthru
      _
    // Predicated region
    $region10: #{tpu_custom_call.1} parent=1 // pred_check
      _
    $region11: #{tpu_custom_call.1} parent=1 // pred_check_branch
      %14 = sbr.rel (0) target = $region13
    $region12: #{tpu_custom_call.1} parent=1 // pred_region
      _
    $region13: #{tpu_custom_call.1} parent=1 // pred_fallthru
      _
    %v16 = vld [vmem:[%s0] sm:$0xff]
    %v17 = vld [vmem:[%s0 + $0x8] sm:$0xff]
    %v18 = vld [vmem:[%s0 + $0x10] sm:$0xff]
    %v19 = vld [vmem:[%s0 + $0x18] sm:$0xff]
    %v20 = vld [vmem:[%s0 + $0x20] sm:$0xff]
    %v21 = vld [vmem:[%s0 + $0x28] sm:$0xff]
    %v22 = vld [vmem:[%s0 + $0x30] sm:$0xff]
    %v23 = vld [vmem:[%s0 + $0x38] sm:$0xff]
    %v24 = vld [vmem:[%s0 + $0x40] sm:$0xff]
    %v25 = vld [vmem:[%s0 + $0x48] sm:$0xff]
    %v26 = vld [vmem:[%s0 + $0x50] sm:$0xff]
    %v27 = vld [vmem:[%s0 + $0x58] sm:$0xff]
    %v28 = vld [vmem:[%s0 + $0x60] sm:$0xff]
    %v29 = vld [vmem:[%s0 + $0x68] sm:$0xff]
    %v30 = vld [vmem:[%s0 + $0x70] sm:$0xff]
    %v31 = vld [vmem:[%s0 + $0x78] sm:$0xff]
    %v32 = vpack.c.bf16 %v17, %v16
    %v33 = vpack.c.bf16 %v19, %v18
    %v34 = vpack.c.bf16 %v21, %v20
    %v35 = vpack.c.bf16 %v23, %v22
    %v36 = vpack.c.bf16 %v25, %v24
    %v37 = vpack.c.bf16 %v27, %v26
    %v38 = vpack.c.bf16 %v29, %v28
    %v39 = vpack.c.bf16 %v31, %v30
    %v40 = vld [vmem:[%s1] sm:$0xf]
    %v41 = vld [vmem:[%s1 + $0x4] sm:$0xf]
    %v44 = vunpack.c.l.b16 %v40
    %v45 = vunpack.c.l.b16 %v41
    %v46 = vpack.c.b16 %v45, %v44
    %vm48 = vcmask 130048
    %v50 = vsel %vm48, %v32, 0
    %v53 = vsel %vm48, %v33, 0
    %v56 = vsel %vm48, %v34, 0
    %v59 = vsel %vm48, %v35, 0
    %v62 = vsel %vm48, %v36, 0
    %v65 = vsel %vm48, %v37, 0
    %v68 = vsel %vm48, %v38, 0
    %v71 = vsel %vm48, %v39, 0
    %73 = vmatpush.bf16.msra.mxu0 0
    %74 = vmatpush.bf16.msra.mxu0 0
    %75 = vmatpush.bf16.msra.mxu0 0
    %76 = vmatpush.bf16.msra.mxu0 0
    %77 = vmatpush.bf16.msra.mxu0 0
    %78 = vmatpush.bf16.msra.mxu0 0
    %79 = vmatpush.bf16.msra.mxu0 0
    %80 = vmatpush.bf16.msra.mxu0 %v46
    %81 = vmatmul.bf16.gmra.mxu0 %v50
    %v82 = vpop.f32.mrf.mxu0
    %v83 = vadd.f32 0.0, %v82
    %v84 = vpop.f32.mrf.mxu0
    %v85 = vadd.f32 0.0, %v84
    %86 = vmatmul.bf16.gmra.mxu0 %v53
    %v87 = vpop.f32.mrf.mxu0
    %v88 = vadd.f32 0.0, %v87
    %v89 = vpop.f32.mrf.mxu0
    %v90 = vadd.f32 0.0, %v89
    %91 = vmatmul.bf16.gmra.mxu0 %v56
    %v92 = vpop.f32.mrf.mxu0
    %v93 = vadd.f32 0.0, %v92
    %v94 = vpop.f32.mrf.mxu0
    %v95 = vadd.f32 0.0, %v94
    %96 = vmatmul.bf16.gmra.mxu0 %v59
    %v97 = vpop.f32.mrf.mxu0
    %v98 = vadd.f32 0.0, %v97
    %v99 = vpop.f32.mrf.mxu0
    %v100 = vadd.f32 0.0, %v99
    %101 = vmatmul.bf16.gmra.mxu0 %v62
    %v102 = vpop.f32.mrf.mxu0
    %v103 = vadd.f32 0.0, %v102
    %v104 = vpop.f32.mrf.mxu0
    %v105 = vadd.f32 0.0, %v104
    %106 = vmatmul.bf16.gmra.mxu0 %v65
    %v107 = vpop.f32.mrf.mxu0
    %v108 = vadd.f32 0.0, %v107
    %v109 = vpop.f32.mrf.mxu0
    %v110 = vadd.f32 0.0, %v109
    %111 = vmatmul.bf16.gmra.mxu0 %v68
    %v112 = vpop.f32.mrf.mxu0
    %v113 = vadd.f32 0.0, %v112
    %v114 = vpop.f32.mrf.mxu0
    %v115 = vadd.f32 0.0, %v114
    %116 = vmatmul.bf16.gmra.mxu0 %v71
    %v117 = vpop.f32.mrf.mxu0
    %v118 = vadd.f32 0.0, %v117
    %v119 = vpop.f32.mrf.mxu0
    %v120 = vadd.f32 0.0, %v119
    %121 = vdwg.mxu0
    %vm122 = vcmask 64512
    %123 = vst.msk [vmem:[#allocation2] sm:$0xff] %vm122, %v83
    %124 = vst.msk [vmem:[#allocation2 + $0x8] sm:$0xff] %vm122, %v85
    %127 = vrot.lane.b32.xlu0 %v83, 120
    %v128 = vpop.permute.xlu0 %127
    %129 = vrot.lane.b32.xlu0 %v85, 120
    %v130 = vpop.permute.xlu0 %129
    %133 = vst.msk [vmem:[#allocation2 + $0x10] sm:$0xff] %vm122, %v128
    %134 = vst.msk [vmem:[#allocation2 + $0x18] sm:$0xff] %vm122, %v130
    %137 = vrot.lane.b32.xlu0 %v88, 8
    %v138 = vpop.permute.xlu0 %137
    %139 = vrot.lane.b32.xlu0 %v90, 8
    %v140 = vpop.permute.xlu0 %139
    %vm143 = vcmask 130112
    %144 = vst.msk [vmem:[#allocation2] sm:$0xff] %vm143, %v138
    %145 = vst.msk [vmem:[#allocation2 + $0x8] sm:$0xff] %vm143, %v140
    %146 = vst.msk [vmem:[#allocation2 + $0x10] sm:$0xff] %vm143, %v88
    %147 = vst.msk [vmem:[#allocation2 + $0x18] sm:$0xff] %vm143, %v90
    %150 = vrot.lane.b32.xlu0 %v93, 16
    %v151 = vpop.permute.xlu0 %150
    %152 = vrot.lane.b32.xlu0 %v95, 16
    %v153 = vpop.permute.xlu0 %152
    %vm156 = vcmask 195712
    %157 = vst.msk [vmem:[#allocation2] sm:$0xff] %vm156, %v151
    %158 = vst.msk [vmem:[#allocation2 + $0x8] sm:$0xff] %vm156, %v153
    %159 = vrot.lane.b32.xlu0 %v93, 8
    %v160 = vpop.permute.xlu0 %159
    %161 = vrot.lane.b32.xlu0 %v95, 8
    %v162 = vpop.permute.xlu0 %161
    %165 = vst.msk [vmem:[#allocation2 + $0x10] sm:$0xff] %vm156, %v160
    %166 = vst.msk [vmem:[#allocation2 + $0x18] sm:$0xff] %vm156, %v162
    %169 = vrot.lane.b32.xlu0 %v98, 24
    %v170 = vpop.permute.xlu0 %169
    %171 = vrot.lane.b32.xlu0 %v100, 24
    %v172 = vpop.permute.xlu0 %171
    %vm175 = vcmask 261312
    %176 = vst.msk [vmem:[#allocation2] sm:$0xff] %vm175, %v170
    %177 = vst.msk [vmem:[#allocation2 + $0x8] sm:$0xff] %vm175, %v172
    %178 = vrot.lane.b32.xlu0 %v98, 16
    %v179 = vpop.permute.xlu0 %178
    %180 = vrot.lane.b32.xlu0 %v100, 16
    %v181 = vpop.permute.xlu0 %180
    %184 = vst.msk [vmem:[#allocation2 + $0x10] sm:$0xff] %vm175, %v179
    %185 = vst.msk [vmem:[#allocation2 + $0x18] sm:$0xff] %vm175, %v181
    %188 = vrot.lane.b32.xlu0 %v103, 32
    %v189 = vpop.permute.xlu0 %188
    %190 = vrot.lane.b32.xlu0 %v105, 32
    %v191 = vpop.permute.xlu0 %190
    %vm194 = vcmask 326912
    %195 = vst.msk [vmem:[#allocation2] sm:$0xff] %vm194, %v189
    %196 = vst.msk [vmem:[#allocation2 + $0x8] sm:$0xff] %vm194, %v191
    %197 = vrot.lane.b32.xlu0 %v103, 24
    %v198 = vpop.permute.xlu0 %197
    %199 = vrot.lane.b32.xlu0 %v105, 24
    %v200 = vpop.permute.xlu0 %199
    %203 = vst.msk [vmem:[#allocation2 + $0x10] sm:$0xff] %vm194, %v198
    %204 = vst.msk [vmem:[#allocation2 + $0x18] sm:$0xff] %vm194, %v200
    %207 = vrot.lane.b32.xlu0 %v108, 40
    %v208 = vpop.permute.xlu0 %207
    %209 = vrot.lane.b32.xlu0 %v110, 40
    %v210 = vpop.permute.xlu0 %209
    %vm213 = vcmask 392512
    %214 = vst.msk [vmem:[#allocation2] sm:$0xff] %vm213, %v208
    %215 = vst.msk [vmem:[#allocation2 + $0x8] sm:$0xff] %vm213, %v210
    %216 = vrot.lane.b32.xlu0 %v108, 32
    %v217 = vpop.permute.xlu0 %216
    %218 = vrot.lane.b32.xlu0 %v110, 32
    %v219 = vpop.permute.xlu0 %218
    %222 = vst.msk [vmem:[#allocation2 + $0x10] sm:$0xff] %vm213, %v217
    %223 = vst.msk [vmem:[#allocation2 + $0x18] sm:$0xff] %vm213, %v219
    %226 = vrot.lane.b32.xlu0 %v113, 48
    %v227 = vpop.permute.xlu0 %226
    %228 = vrot.lane.b32.xlu0 %v115, 48
    %v229 = vpop.permute.xlu0 %228
    %vm232 = vcmask 458112
    %233 = vst.msk [vmem:[#allocation2] sm:$0xff] %vm232, %v227
    %234 = vst.msk [vmem:[#allocation2 + $0x8] sm:$0xff] %vm232, %v229
    %235 = vrot.lane.b32.xlu0 %v113, 40
    %v236 = vpop.permute.xlu0 %235
    %237 = vrot.lane.b32.xlu0 %v115, 40
    %v238 = vpop.permute.xlu0 %237
    %241 = vst.msk [vmem:[#allocation2 + $0x10] sm:$0xff] %vm232, %v236
    %242 = vst.msk [vmem:[#allocation2 + $0x18] sm:$0xff] %vm232, %v238
    %245 = vrot.lane.b32.xlu0 %v118, 56
    %v246 = vpop.permute.xlu0 %245
    %247 = vrot.lane.b32.xlu0 %v120, 56
    %v248 = vpop.permute.xlu0 %247
    %vm251 = vcmask 523712
    %252 = vst.msk [vmem:[#allocation2] sm:$0xff] %vm251, %v246
    %253 = vst.msk [vmem:[#allocation2 + $0x8] sm:$0xff] %vm251, %v248
    %254 = vrot.lane.b32.xlu0 %v118, 48
    %v255 = vpop.permute.xlu0 %254
    %256 = vrot.lane.b32.xlu0 %v120, 48
    %v257 = vpop.permute.xlu0 %256
    %260 = vst.msk [vmem:[#allocation2 + $0x10] sm:$0xff] %vm251, %v255
    %261 = vst.msk [vmem:[#allocation2 + $0x18] sm:$0xff] %vm251, %v257
    %v262 = vld [vmem:[%s2] sm:$0xff]
    %v263 = vld [vmem:[#allocation2] sm:$0xff]
    %v264 = vld [vmem:[#allocation2 + $0x8] sm:$0xff]
    %v265 = vld [vmem:[#allocation2 + $0x10] sm:$0xff]
    %v266 = vld [vmem:[#allocation2 + $0x18] sm:$0xff]
    %vm267 = vcmask 261120
    %v269 = vsel %vm267, %v262, 0
    %271 = vmatpush.msra.mxu0 0.0
    %272 = vmatpush.msra.mxu0 0.0
    %273 = vmatpush.msra.mxu0 0.0
    %274 = vmatpush.msra.mxu0 0.0
    %275 = vmatpush.msra.mxu0 0.0
    %276 = vmatpush.msra.mxu0 0.0
    %277 = vmatpush.msra.mxu0 0.0
    %278 = vmatpush.msra.mxu0 0.0
    %279 = vmatpush.msra.mxu0 0.0
    %280 = vmatpush.msra.mxu0 0.0
    %281 = vmatpush.msra.mxu0 0.0
    %282 = vmatpush.msra.mxu0 0.0
    %283 = vmatpush.msra.mxu0 %v266
    %284 = vmatpush.msra.mxu0 %v265
    %285 = vmatpush.msra.mxu0 %v264
    %286 = vmatpush.msra.mxu0 %v263
    %287 = vmatmul.f32.gmra.mxu0 %v269
    %v288 = vpop.f32.mrf.mxu0
    %v289 = vadd.f32 0.0, %v288
    %290 = vdwg.mxu0
    %vm291 = vcmask 523264
    %292 = vst.msk [vmem:[#allocation3] sm:$0xff] %vm291, %v289
    // Predicated region
    $region14: #{tpu_custom_call.1} parent=1 // pred_check
      _
    $region15: #{tpu_custom_call.1} parent=1 // pred_check_branch
      %294 = sbr.rel (0) target = $region17
    $region16: #{tpu_custom_call.1} parent=1 // pred_region
      %296 = vsyncadd [#allocation4], 0
      %s298 = sshll.u32 [#allocation3], 4
      %s299 = int_to_ptr.vmem [resolvable:$true] %s298
      %s300 = sshll.u32 %s3, 4
      %s301 = int_to_ptr.hbm [resolvable:$true] %s300
      %303 = dma.vmem_to_hbm [thread:$0]  %s299, 128, %s301, [#allocation4]
    $region17: #{tpu_custom_call.1} parent=1 // pred_fallthru
      _
    // Predicated region
    $region18: #{tpu_custom_call.1} parent=1 // pred_check
      _
    $region19: #{tpu_custom_call.1} parent=1 // pred_check_branch
      %305 = sbr.rel (0) target = $region21
    $region20: #{tpu_custom_call.1} parent=1 // pred_region
      %307 = dma.done [#allocation4], 128
    $region21: #{tpu_custom_call.1} parent=1 // pred_fallthru
      _
    %308 = vsyncpa [#allocation4], 1

</llo_original>
